<compile_context>
chip_gen: v5e
topology: v5e:2x2
jax: 0.10.0
libtpu: 0.0.40
codegen_flags: <defaults>
</compile_context>

<pallas_src>
import functools

import jax
import jax.numpy as jnp
from jax.experimental import pallas as pl
from jax.experimental.pallas import tpu as pltpu


# ---------------------------------------------------------------------------
# Pallas kernel: one grid step per batch element.  All 1x1-conv matmuls, the
# embedded-Gaussian affinity, softmax and the residual run inside the kernel.
# ---------------------------------------------------------------------------
def _nl_cross_kernel(xt_ref, xo_ref, wgt_ref, bgt_ref, wph_ref, bph_ref,
                     wz_ref, bz_ref, o_ref, *, inter_channels):
    Ci = inter_channels
    xt = xt_ref[0].astype(jnp.float32)            # (N, C)  x_thisBranch tokens
    xo = xo_ref[0].astype(jnp.float32)            # (N, C)  x_otherBranch tokens

    # Fused g + theta 1x1-conv projections of x_this: one K=C matmul.
    gt = jnp.dot(xt, wgt_ref[...],
                 preferred_element_type=jnp.float32) + bgt_ref[...]   # (N, 2*Ci)
    g_x = gt[:, :Ci]                              # (N, Ci)
    theta = gt[:, Ci:]                            # (N, Ci)

    # phi 1x1-conv projection of x_other.
    phi = jnp.dot(xo, wph_ref[...],
                  preferred_element_type=jnp.float32) + bph_ref[...]  # (N, Ci)

    # f[n, m] = phi[n] . theta[m]   (embedded Gaussian affinity), trans-B dot.
    f = jax.lax.dot_general(phi, theta, (((1,), (1,)), ((), ())),
                            preferred_element_type=jnp.float32)       # (N, N)

    # softmax over keys (last dim), numerically stabilized.
    f = f - jnp.max(f, axis=-1, keepdims=True)
    p = jnp.exp(f)
    p = p * pl.reciprocal(jnp.sum(p, axis=-1, keepdims=True), approx=True)

    # y = softmax(f) @ g_x
    y = jnp.dot(p, g_x, preferred_element_type=jnp.float32)           # (N, Ci)

    # W_z 1x1 conv with BatchNorm folded in, plus residual; single slab write.
    z = (jnp.dot(y, wz_ref[...], preferred_element_type=jnp.float32)
         + bz_ref[...] + xt)                                          # (N, C)
    o_ref[0] = z.astype(o_ref.dtype)


# ---------------------------------------------------------------------------
# Wrapper: NCHW -> token-major (B, N, C), weight prep (transpose, g/theta
# fusion, BN folding), pallas_call, and back to NCHW.
# ---------------------------------------------------------------------------
def nl_block_cross_pallas(x_this, x_other, params):
    (wg, bg, wth, bth, wph, bph, wz, bz, gamma, beta, rmean, rvar, eps) = params
    B, C, H, W = x_this.shape
    N = H * W
    Ci = wg.shape[0]

    # (B, C, H, W) -> (B, N, C), token order h*W + w (matches torch .view).
    xt = x_this.reshape(B, C, N).transpose(0, 2, 1)
    xo = x_other.reshape(B, C, N).transpose(0, 2, 1)

    # 1x1 conv weights as (in, out); fuse g and theta into one matmul.
    w_gt = jnp.concatenate([wg.T, wth.T], axis=1)            # (C, 2*Ci)
    b_gt = jnp.concatenate([bg, bth]).reshape(1, 2 * Ci)
    wph_t = wph.T                                            # (C, Ci)
    bph_2 = bph.reshape(1, Ci)

    # Fold BatchNorm (inference) into W_z: y*scale*W + (b - mean)*scale + beta.
    bn_scale = gamma * jax.lax.rsqrt(rvar + eps)             # (C,)
    wz_eff = (wz * bn_scale[:, None]).T                      # (Ci, C)
    bz_eff = ((bz - rmean) * bn_scale + beta).reshape(1, C)

    kernel = functools.partial(_nl_cross_kernel, inter_channels=Ci)

    out = pl.pallas_call(
        kernel,
        out_shape=jax.ShapeDtypeStruct((B, N, C), x_this.dtype),
        grid_spec=pltpu.PrefetchScalarGridSpec(
            num_scalar_prefetch=0,
            grid=(B,),
            in_specs=[
                pl.BlockSpec((1, N, C), lambda b: (b, 0, 0)),      # x_this tokens
                pl.BlockSpec((1, N, C), lambda b: (b, 0, 0)),      # x_other tokens
                pl.BlockSpec((C, 2 * Ci), lambda b: (0, 0)),       # [Wg^T | Wth^T]
                pl.BlockSpec((1, 2 * Ci), lambda b: (0, 0)),       # [bg | bth]
                pl.BlockSpec((C, Ci), lambda b: (0, 0)),           # Wphi^T
                pl.BlockSpec((1, Ci), lambda b: (0, 0)),           # bphi
                pl.BlockSpec((Ci, C), lambda b: (0, 0)),           # Wz^T (BN folded)
                pl.BlockSpec((1, C), lambda b: (0, 0)),            # bz (BN folded)
            ],
            out_specs=pl.BlockSpec((1, N, C), lambda b: (b, 0, 0)),
        ),
        compiler_params=pltpu.CompilerParams(
            dimension_semantics=("parallel",)),                    # 2 TCs on v7x
    )(xt, xo, w_gt, b_gt, wph_t, bph_2, wz_eff, bz_eff)

    # (B, N, C) -> (B, C, H, W)
    return out.transpose(0, 2, 1).reshape(B, C, H, W)


# ---------------------------------------------------------------------------
# Pure-JAX reference mirroring the PyTorch forward (mode='embedded', bn_layer).
# ---------------------------------------------------------------------------
def _conv1x1(x, w, b):
    return jnp.einsum("oc,bchw->bohw", w, x) + b[None, :, None, None]


def nl_block_cross_ref(x_this, x_other, params):
    (wg, bg, wth, bth, wph, bph, wz, bz, gamma, beta, rmean, rvar, eps) = params
    B, C, H, W = x_this.shape
    Ci = wg.shape[0]
    N = H * W

    g_x = _conv1x1(x_this, wg, bg).reshape(B, Ci, N).transpose(0, 2, 1)   # (B,N,Ci)
    theta = _conv1x1(x_this, wth, bth).reshape(B, Ci, N)                  # (B,Ci,N)
    phi = _conv1x1(x_other, wph, bph).reshape(B, Ci, N).transpose(0, 2, 1)

    f = phi @ theta                                                        # (B,N,N)
    f_div_C = jax.nn.softmax(f, axis=-1)
    y = f_div_C @ g_x                                                      # (B,N,Ci)
    y = y.transpose(0, 2, 1).reshape(B, Ci, H, W)

    w_y = _conv1x1(y, wz, bz)
    w_y = (gamma[None, :, None, None]
           * (w_y - rmean[None, :, None, None])
           * jax.lax.rsqrt(rvar[None, :, None, None] + eps)
           + beta[None, :, None, None])
    return w_y + x_this


if __name__ == "__main__":
    # Small shapes consistent with the module: B=2, in_channels=64, 8x8 spatial
    # -> N=64 tokens, inter_channels=32.
    B, C, Hs, Ws = 2, 64, 8, 8
    Ci = C // 2
    eps = 1e-5

    key = jax.random.PRNGKey(0)
    keys = jax.random.split(key, 12)
    x_this = jax.random.normal(keys[0], (B, C, Hs, Ws), dtype=jnp.float32)
    x_other = jax.random.normal(keys[1], (B, C, Hs, Ws), dtype=jnp.float32)

    s = 0.05
    wg = s * jax.random.normal(keys[2], (Ci, C), dtype=jnp.float32)
    bg = s * jax.random.normal(keys[3], (Ci,), dtype=jnp.float32)
    wth = s * jax.random.normal(keys[4], (Ci, C), dtype=jnp.float32)
    bth = s * jax.random.normal(keys[5], (Ci,), dtype=jnp.float32)
    wph = s * jax.random.normal(keys[6], (Ci, C), dtype=jnp.float32)
    bph = s * jax.random.normal(keys[7], (Ci,), dtype=jnp.float32)
    wz = s * jax.random.normal(keys[8], (C, Ci), dtype=jnp.float32)
    bz = s * jax.random.normal(keys[9], (C,), dtype=jnp.float32)
    # The module inits BN gamma=0, beta=0 (which makes W_z's branch output 0);
    # use non-trivial BN params here so the full compute path is exercised.
    gamma = 1.0 + 0.1 * jax.random.normal(keys[10], (C,), dtype=jnp.float32)
    beta = 0.1 * jax.random.normal(keys[11], (C,), dtype=jnp.float32)
    rmean = jnp.zeros((C,), dtype=jnp.float32)
    rvar = jnp.ones((C,), dtype=jnp.float32)

    params = (wg, bg, wth, bth, wph, bph, wz, bz, gamma, beta, rmean, rvar, eps)

    out = nl_block_cross_pallas(x_this, x_other, params)
    out = jax.block_until_ready(out)

    ref = nl_block_cross_ref(x_this, x_other, params)
    assert out.shape == (B, C, Hs, Ws)
    max_err = jnp.max(jnp.abs(out - ref))
    assert jnp.allclose(out, ref, atol=2e-3, rtol=2e-3), f"max abs err {max_err}"

    print("KERNEL_OK")
</pallas_src>

<mosaic_0001>
module attributes {stable_mosaic.version = 11 : i64} {
  func.func @_nl_cross_kernel(%arg0: i32, %arg1: memref<1x64x64xf32, #tpu.memory_space<vmem>>, %arg2: memref<1x64x64xf32, #tpu.memory_space<vmem>>, %arg3: memref<64x64xf32, #tpu.memory_space<vmem>>, %arg4: memref<1x64xf32, #tpu.memory_space<vmem>>, %arg5: memref<64x32xf32, #tpu.memory_space<vmem>>, %arg6: memref<1x32xf32, #tpu.memory_space<vmem>>, %arg7: memref<32x64xf32, #tpu.memory_space<vmem>>, %arg8: memref<1x64xf32, #tpu.memory_space<vmem>>, %arg9: memref<1x64x64xf32, #tpu.memory_space<vmem>>) attributes {dimension_semantics = [#tpu.dimension_semantics<parallel>], iteration_bounds = array<i64: 2>, scalar_prefetch = 0 : i64, scratch_operands = 0 : i64, tpu.core_type = #tpu.core_type<tc>, window_params = [{transform_indices = @transform_0, window_bounds = array<i64: 1, 64, 64>}, {transform_indices = @transform_1, window_bounds = array<i64: 1, 64, 64>}, {pipeline_mode = #tpu.pipeline_mode<synchronous>, transform_indices = @transform_2, window_bounds = array<i64: 64, 64>}, {pipeline_mode = #tpu.pipeline_mode<synchronous>, transform_indices = @transform_3, window_bounds = array<i64: 1, 64>}, {pipeline_mode = #tpu.pipeline_mode<synchronous>, transform_indices = @transform_4, window_bounds = array<i64: 64, 32>}, {pipeline_mode = #tpu.pipeline_mode<synchronous>, transform_indices = @transform_5, window_bounds = array<i64: 1, 32>}, {pipeline_mode = #tpu.pipeline_mode<synchronous>, transform_indices = @transform_6, window_bounds = array<i64: 32, 64>}, {pipeline_mode = #tpu.pipeline_mode<synchronous>, transform_indices = @transform_7, window_bounds = array<i64: 1, 64>}, {transform_indices = @transform_8, window_bounds = array<i64: 1, 64, 64>}]} {
    %c0 = arith.constant 0 : index
    %c0_0 = arith.constant 0 : index
    %c0_1 = arith.constant 0 : index
    %0 = vector.load %arg1[%c0, %c0_0, %c0_1] : memref<1x64x64xf32, #tpu.memory_space<vmem>>, vector<1x64x64xf32>
    %1 = vector.shape_cast %0 : vector<1x64x64xf32> to vector<64x64xf32>
    %c0_2 = arith.constant 0 : index
    %c0_3 = arith.constant 0 : index
    %c0_4 = arith.constant 0 : index
    %2 = vector.load %arg2[%c0_2, %c0_3, %c0_4] : memref<1x64x64xf32, #tpu.memory_space<vmem>>, vector<1x64x64xf32>
    %3 = vector.shape_cast %2 : vector<1x64x64xf32> to vector<64x64xf32>
    %c0_5 = arith.constant 0 : index
    %c0_6 = arith.constant 0 : index
    %4 = vector.load %arg3[%c0_5, %c0_6] : memref<64x64xf32, #tpu.memory_space<vmem>>, vector<64x64xf32>
    %cst = arith.constant dense<0.000000e+00> : vector<64x64xf32>
    %5 = tpu.matmul %1, %4, %cst {dimension_numbers = #tpu.dot_dimension_numbers<[1], [0], [0], [1], [0, 0, 1, 1], [], []>} : vector<64x64xf32>, vector<64x64xf32>, vector<64x64xf32> -> vector<64x64xf32>
    %c0_7 = arith.constant 0 : index
    %c0_8 = arith.constant 0 : index
    %6 = vector.load %arg4[%c0_7, %c0_8] : memref<1x64xf32, #tpu.memory_space<vmem>>, vector<1x64xf32>
    %7 = vector.broadcast %6 : vector<1x64xf32> to vector<64x64xf32>
    %8 = arith.addf %5, %7 : vector<64x64xf32>
    %9 = vector.extract_strided_slice %8 {offsets = [0, 0], sizes = [64, 32], strides = [1, 1]} : vector<64x64xf32> to vector<64x32xf32>
    %10 = vector.extract_strided_slice %8 {offsets = [0, 32], sizes = [64, 32], strides = [1, 1]} : vector<64x64xf32> to vector<64x32xf32>
    %c0_9 = arith.constant 0 : index
    %c0_10 = arith.constant 0 : index
    %11 = vector.load %arg5[%c0_9, %c0_10] : memref<64x32xf32, #tpu.memory_space<vmem>>, vector<64x32xf32>
    %cst_11 = arith.constant dense<0.000000e+00> : vector<64x32xf32>
    %12 = tpu.matmul %3, %11, %cst_11 {dimension_numbers = #tpu.dot_dimension_numbers<[1], [0], [0], [1], [0, 0, 1, 1], [], []>} : vector<64x64xf32>, vector<64x32xf32>, vector<64x32xf32> -> vector<64x32xf32>
    %c0_12 = arith.constant 0 : index
    %c0_13 = arith.constant 0 : index
    %13 = vector.load %arg6[%c0_12, %c0_13] : memref<1x32xf32, #tpu.memory_space<vmem>>, vector<1x32xf32>
    %14 = vector.broadcast %13 : vector<1x32xf32> to vector<64x32xf32>
    %15 = arith.addf %12, %14 : vector<64x32xf32>
    %cst_14 = arith.constant dense<0.000000e+00> : vector<64x64xf32>
    %16 = tpu.matmul %15, %10, %cst_14 {dimension_numbers = #tpu.dot_dimension_numbers<[1], [1], [0], [0], [0, 0, 1, 0], [], []>} : vector<64x32xf32>, vector<64x32xf32>, vector<64x64xf32> -> vector<64x64xf32>
    %cst_15 = arith.constant dense<0xFF800000> : vector<64xf32>
    %17 = vector.multi_reduction <maximumf>, %16, %cst_15 [1] : vector<64x64xf32> to vector<64xf32>
    %18 = vector.shape_cast %17 : vector<64xf32> to vector<64x1xf32>
    %19 = vector.broadcast %18 : vector<64x1xf32> to vector<64x64xf32>
    %20 = arith.subf %16, %19 : vector<64x64xf32>
    %21 = math.exp %20 : vector<64x64xf32>
    %cst_16 = arith.constant dense<0.000000e+00> : vector<64xf32>
    %22 = vector.multi_reduction <add>, %21, %cst_16 [1] : vector<64x64xf32> to vector<64xf32>
    %23 = vector.shape_cast %22 : vector<64xf32> to vector<64x1xf32>
    %24 = tpu.reciprocal %23 {approx = true} : vector<64x1xf32> -> vector<64x1xf32>
    %25 = vector.broadcast %24 : vector<64x1xf32> to vector<64x64xf32>
    %26 = arith.mulf %21, %25 : vector<64x64xf32>
    %cst_17 = arith.constant dense<0.000000e+00> : vector<64x32xf32>
    %27 = tpu.matmul %26, %9, %cst_17 {dimension_numbers = #tpu.dot_dimension_numbers<[1], [0], [0], [1], [0, 0, 1, 1], [], []>} : vector<64x64xf32>, vector<64x32xf32>, vector<64x32xf32> -> vector<64x32xf32>
    %c0_18 = arith.constant 0 : index
    %c0_19 = arith.constant 0 : index
    %28 = vector.load %arg7[%c0_18, %c0_19] : memref<32x64xf32, #tpu.memory_space<vmem>>, vector<32x64xf32>
    %cst_20 = arith.constant dense<0.000000e+00> : vector<64x64xf32>
    %29 = tpu.matmul %27, %28, %cst_20 {dimension_numbers = #tpu.dot_dimension_numbers<[1], [0], [0], [1], [0, 0, 1, 1], [], []>} : vector<64x32xf32>, vector<32x64xf32>, vector<64x64xf32> -> vector<64x64xf32>
    %c0_21 = arith.constant 0 : index
    %c0_22 = arith.constant 0 : index
    %30 = vector.load %arg8[%c0_21, %c0_22] : memref<1x64xf32, #tpu.memory_space<vmem>>, vector<1x64xf32>
    %31 = vector.broadcast %30 : vector<1x64xf32> to vector<64x64xf32>
    %32 = arith.addf %29, %31 : vector<64x64xf32>
    %33 = arith.addf %32, %1 : vector<64x64xf32>
    %c0_23 = arith.constant 0 : index
    %c0_24 = arith.constant 0 : index
    %c0_25 = arith.constant 0 : index
    %34 = vector.load %arg9[%c0_23, %c0_24, %c0_25] : memref<1x64x64xf32, #tpu.memory_space<vmem>>, vector<1x64x64xf32>
    %35 = vector.shape_cast %34 : vector<1x64x64xf32> to vector<64x64xf32>
    %36 = vector.shape_cast %33 : vector<64x64xf32> to vector<1x64x64xf32>
    tpu.vector_store %arg9[%c0_23, %c0_24, %c0_25], %36 {strides = array<i32>} : memref<1x64x64xf32, #tpu.memory_space<vmem>>, vector<1x64x64xf32>,
    return
  }
  func.func @transform_0(%arg0: i32) -> (i32, i32, i32) {
    %c0_i32 = arith.constant 0 : i32
    %c0_i32_0 = arith.constant 0 : i32
    %c0_i32_1 = arith.constant 0 : i32
    return %arg0, %c0_i32, %c0_i32_0 : i32, i32, i32
  }
  func.func @transform_1(%arg0: i32) -> (i32, i32, i32) {
    %c0_i32 = arith.constant 0 : i32
    %c0_i32_0 = arith.constant 0 : i32
    %c0_i32_1 = arith.constant 0 : i32
    return %arg0, %c0_i32, %c0_i32_0 : i32, i32, i32
  }
  func.func @transform_2(%arg0: i32) -> (i32, i32) {
    %c0_i32 = arith.constant 0 : i32
    %c0_i32_0 = arith.constant 0 : i32
    %c0_i32_1 = arith.constant 0 : i32
    return %c0_i32, %c0_i32_0 : i32, i32
  }
  func.func @transform_3(%arg0: i32) -> (i32, i32) {
    %c0_i32 = arith.constant 0 : i32
    %c0_i32_0 = arith.constant 0 : i32
    %c0_i32_1 = arith.constant 0 : i32
    return %c0_i32, %c0_i32_0 : i32, i32
  }
  func.func @transform_4(%arg0: i32) -> (i32, i32) {
    %c0_i32 = arith.constant 0 : i32
    %c0_i32_0 = arith.constant 0 : i32
    %c0_i32_1 = arith.constant 0 : i32
    return %c0_i32, %c0_i32_0 : i32, i32
  }
  func.func @transform_5(%arg0: i32) -> (i32, i32) {
    %c0_i32 = arith.constant 0 : i32
    %c0_i32_0 = arith.constant 0 : i32
    %c0_i32_1 = arith.constant 0 : i32
    return %c0_i32, %c0_i32_0 : i32, i32
  }
  func.func @transform_6(%arg0: i32) -> (i32, i32) {
    %c0_i32 = arith.constant 0 : i32
    %c0_i32_0 = arith.constant 0 : i32
    %c0_i32_1 = arith.constant 0 : i32
    return %c0_i32, %c0_i32_0 : i32, i32
  }
  func.func @transform_7(%arg0: i32) -> (i32, i32) {
    %c0_i32 = arith.constant 0 : i32
    %c0_i32_0 = arith.constant 0 : i32
    %c0_i32_1 = arith.constant 0 : i32
    return %c0_i32, %c0_i32_0 : i32, i32
  }
  func.func @transform_8(%arg0: i32) -> (i32, i32, i32) {
    %c0_i32 = arith.constant 0 : i32
    %c0_i32_0 = arith.constant 0 : i32
    %c0_i32_1 = arith.constant 0 : i32
    return %arg0, %c0_i32, %c0_i32_0 : i32, i32, i32
  }
}

</mosaic_0001>

<llo_original>
// kernel: tpu_custom_call.1
$region0: #{tpu_custom_call.1}
  #allocation0 [shape = 'u32[]', space=smem, size = 0x4, offset = 0x4, fixed_abs, tag = 'smem constant byte address 0x4 - core index']
  #allocation1 [shape = 'u32[72,128]{1,0:T(1,128)}', space=vmem, size = 0x9000, scoped, tag = 'internal scratch']
  %s0 = inlined_call_operand.hbm [shape: f32[2,64,64], index: 0, kind: input, shape index: {}]
  %s1 = inlined_call_operand.hbm [shape: f32[2,64,64], index: 1, kind: input, shape index: {}]
  %s2 = inlined_call_operand.vmem [shape: f32[64,64], index: 2, kind: input, shape index: {}]
  %s3 = inlined_call_operand.vmem [shape: f32[1,64], index: 3, kind: input, shape index: {}]
  %s4 = inlined_call_operand.vmem [shape: f32[64,32], index: 4, kind: input, shape index: {}]
  %s5 = inlined_call_operand.vmem [shape: f32[1,32], index: 5, kind: input, shape index: {}]
  %s6 = inlined_call_operand.vmem [shape: f32[32,64], index: 6, kind: input, shape index: {}]
  %s7 = inlined_call_operand.vmem [shape: f32[1,64], index: 7, kind: input, shape index: {}]
  %s8 = inlined_call_operand.hbm [shape: f32[2,64,64], index: 8, kind: output, shape index: {}]
  %s9 = sld [smem:[#allocation0]]
  $region73: #{tpu_custom_call.1} parent=0
    _
  %s11 = ssub.s32 1, %s9
  %s12 = scalar_select 0, %s11, %s9
  $region1: #{tpu_custom_call.1} parent=0
    #allocation2 [shape = 'u8[65536]{0}', space=vmem, size = 0x10000, scoped, tag = 'input window, operand 0']
    #allocation3 [shape = 's32[2]{0}', space=sflag, size = 0x8, scoped, tag = 'scoped memory for tpu_custom_call.1']
    #allocation4 [shape = 's32[2]{0}', space=sflag, size = 0x8, scoped, tag = 'scoped memory for tpu_custom_call.1']
    #allocation5 [shape = 'u8[65536]{0}', space=vmem, size = 0x10000, scoped, tag = 'input window, operand 1']
    #allocation6 [shape = 's32[2]{0}', space=sflag, size = 0x8, scoped, tag = 'scoped memory for tpu_custom_call.1']
    #allocation7 [shape = 'u8[65536]{0}', space=vmem, size = 0x10000, scoped, tag = 'output window, operand 0']
    %13 = vsyncpa [#allocation3], 0
    %s14 = scalar_lea.sflag [#allocation3], 1
    %15 = vsyncpa %s14, 0
    %16 = vsyncpa [#allocation6], 0
    %s17 = scalar_lea.sflag [#allocation6], 1
    %18 = vsyncpa %s17, 0
    %19 = vsyncpa [#allocation4], 0
    %s20 = scalar_lea.sflag [#allocation4], 1
    %21 = vsyncpa %s20, 0
    loop: start=0, step=1, limit=4
    $region2: #{tpu_custom_call.1} parent=1 // loop_pre_header
      _
    $region3: #{tpu_custom_call.1} parent=1 // loop_header
      %s23 = sphi 0, %s27
      %p24 = scmp.ge.s32.totalorder %s23, 4
      %s33 = sphi 0, %s35
      %s36 = sphi 0, %s33
      %s37 = sphi 0, %s36
      %s53 = sphi 0, %s37
      %s59 = sphi 0, %s61
      %s62 = sphi 0, %s59
      %s63 = sphi 0, %s62
      %s79 = sphi 0, %s63
      %s83 = sphi 0, %s83
      %s85 = sphi 0, %s83
      %s86 = sphi 0, %s85
      %s100 = sphi 0, %s86
      %s104 = sphi 0, %s104
      %s106 = sphi 0, %s104
      %s107 = sphi 0, %s106
      %s121 = sphi 0, %s107
      %s125 = sphi 0, %s125
      %s127 = sphi 0, %s125
      %s128 = sphi 0, %s127
      %s142 = sphi 0, %s128
      %s146 = sphi 0, %s146
      %s148 = sphi 0, %s146
      %s149 = sphi 0, %s148
      %s163 = sphi 0, %s149
      %s167 = sphi 0, %s167
      %s169 = sphi 0, %s167
      %s170 = sphi 0, %s169
      %s184 = sphi 0, %s170
      %s188 = sphi 0, %s188
      %s190 = sphi 0, %s188
      %s191 = sphi 0, %s190
      %s205 = sphi 0, %s191
      %s211 = sphi 0, %s213
      %s214 = sphi 0, %s211
      %s215 = sphi 0, %s214
      %s231 = sphi 0, %s215
    $region4: #{tpu_custom_call.1} parent=1 // loop_header_branch
      %26 = sbr.rel (%p24) target = $region8
    $region5: #{tpu_custom_call.1} parent=1 // loop_body
      %s28 = ssub.s32 %s23, 1
      %s29 = ssub.s32 %s23, 2
      %s30 = sadd.s32 %s23, 1
      %s31 = ssub.s32 %s23, %s30
      %p32 = scmp.eq.s32.totalorder %s31, 0
      %s34 = sadd.s32 %s33, 1
      %s35 = scalar_select %p32, %s33, %s34
      %p38 = pneg %p32
      %p39 = scmp.eq.s32.totalorder %s23, 1
      %p40 = por %p38, %p39
      %p41 = scmp.ne.s32.totalorder %s33, %s36
      %p42 = scmp.eq.s32.totalorder %s23, 0
      %p43 = por %p41, %p42
      %p44 = scmp.ne.s32.totalorder %s33, %s36
      %p45 = scmp.eq.s32.totalorder %s28, 1
      %p46 = por %p44, %p45
      %p47 = scmp.ne.s32.totalorder %s36, %s37
      %p48 = scmp.eq.s32.totalorder %s28, 0
      %p49 = por %p47, %p48
      %p50 = scmp.ne.s32.totalorder %s36, %s37
      %p51 = scmp.eq.s32.totalorder %s29, 1
      %p52 = por %p50, %p51
      %p54 = scmp.ne.s32.totalorder %s37, %s53
      %p55 = scmp.eq.s32.totalorder %s29, 0
      %p56 = por %p54, %p55
      %s57 = ssub.s32 %s23, %s30
      %p58 = scmp.eq.s32.totalorder %s57, 0
      %s60 = sadd.s32 %s59, 1
      %s61 = scalar_select %p58, %s59, %s60
      %p64 = pneg %p58
      %p65 = scmp.eq.s32.totalorder %s23, 1
      %p66 = por %p64, %p65
      %p67 = scmp.ne.s32.totalorder %s59, %s62
      %p68 = scmp.eq.s32.totalorder %s23, 0
      %p69 = por %p67, %p68
      %p70 = scmp.ne.s32.totalorder %s59, %s62
      %p71 = scmp.eq.s32.totalorder %s28, 1
      %p72 = por %p70, %p71
      %p73 = scmp.ne.s32.totalorder %s62, %s63
      %p74 = scmp.eq.s32.totalorder %s28, 0
      %p75 = por %p73, %p74
      %p76 = scmp.ne.s32.totalorder %s62, %s63
      %p77 = scmp.eq.s32.totalorder %s29, 1
      %p78 = por %p76, %p77
      %p80 = scmp.ne.s32.totalorder %s63, %s79
      %p81 = scmp.eq.s32.totalorder %s29, 0
      %p82 = por %p80, %p81
      %s84 = sadd.s32 %s83, 1
      %p87 = scmp.eq.s32.totalorder %s23, 1
      %p88 = scmp.ne.s32.totalorder %s83, %s85
      %p89 = scmp.eq.s32.totalorder %s23, 0
      %p90 = por %p88, %p89
      %p91 = scmp.ne.s32.totalorder %s83, %s85
      %p92 = scmp.eq.s32.totalorder %s28, 1
      %p93 = por %p91, %p92
      %p94 = scmp.ne.s32.totalorder %s85, %s86
      %p95 = scmp.eq.s32.totalorder %s28, 0
      %p96 = por %p94, %p95
      %p97 = scmp.ne.s32.totalorder %s85, %s86
      %p98 = scmp.eq.s32.totalorder %s29, 1
      %p99 = por %p97, %p98
      %p101 = scmp.ne.s32.totalorder %s86, %s100
      %p102 = scmp.eq.s32.totalorder %s29, 0
      %p103 = por %p101, %p102
      %s105 = sadd.s32 %s104, 1
      %p108 = scmp.eq.s32.totalorder %s23, 1
      %p109 = scmp.ne.s32.totalorder %s104, %s106
      %p110 = scmp.eq.s32.totalorder %s23, 0
      %p111 = por %p109, %p110
      %p112 = scmp.ne.s32.totalorder %s104, %s106
      %p113 = scmp.eq.s32.totalorder %s28, 1
      %p114 = por %p112, %p113
      %p115 = scmp.ne.s32.totalorder %s106, %s107
      %p116 = scmp.eq.s32.totalorder %s28, 0
      %p117 = por %p115, %p116
      %p118 = scmp.ne.s32.totalorder %s106, %s107
      %p119 = scmp.eq.s32.totalorder %s29, 1
      %p120 = por %p118, %p119
      %p122 = scmp.ne.s32.totalorder %s107, %s121
      %p123 = scmp.eq.s32.totalorder %s29, 0
      %p124 = por %p122, %p123
      %s126 = sadd.s32 %s125, 1
      %p129 = scmp.eq.s32.totalorder %s23, 1
      %p130 = scmp.ne.s32.totalorder %s125, %s127
      %p131 = scmp.eq.s32.totalorder %s23, 0
      %p132 = por %p130, %p131
      %p133 = scmp.ne.s32.totalorder %s125, %s127
      %p134 = scmp.eq.s32.totalorder %s28, 1
      %p135 = por %p133, %p134
      %p136 = scmp.ne.s32.totalorder %s127, %s128
      %p137 = scmp.eq.s32.totalorder %s28, 0
      %p138 = por %p136, %p137
      %p139 = scmp.ne.s32.totalorder %s127, %s128
      %p140 = scmp.eq.s32.totalorder %s29, 1
      %p141 = por %p139, %p140
      %p143 = scmp.ne.s32.totalorder %s128, %s142
      %p144 = scmp.eq.s32.totalorder %s29, 0
      %p145 = por %p143, %p144
      %s147 = sadd.s32 %s146, 1
      %p150 = scmp.eq.s32.totalorder %s23, 1
      %p151 = scmp.ne.s32.totalorder %s146, %s148
      %p152 = scmp.eq.s32.totalorder %s23, 0
      %p153 = por %p151, %p152
      %p154 = scmp.ne.s32.totalorder %s146, %s148
      %p155 = scmp.eq.s32.totalorder %s28, 1
      %p156 = por %p154, %p155
      %p157 = scmp.ne.s32.totalorder %s148, %s149
      %p158 = scmp.eq.s32.totalorder %s28, 0
      %p159 = por %p157, %p158
      %p160 = scmp.ne.s32.totalorder %s148, %s149
      %p161 = scmp.eq.s32.totalorder %s29, 1
      %p162 = por %p160, %p161
      %p164 = scmp.ne.s32.totalorder %s149, %s163
      %p165 = scmp.eq.s32.totalorder %s29, 0
      %p166 = por %p164, %p165
      %s168 = sadd.s32 %s167, 1
      %p171 = scmp.eq.s32.totalorder %s23, 1
      %p172 = scmp.ne.s32.totalorder %s167, %s169
      %p173 = scmp.eq.s32.totalorder %s23, 0
      %p174 = por %p172, %p173
      %p175 = scmp.ne.s32.totalorder %s167, %s169
      %p176 = scmp.eq.s32.totalorder %s28, 1
      %p177 = por %p175, %p176
      %p178 = scmp.ne.s32.totalorder %s169, %s170
      %p179 = scmp.eq.s32.totalorder %s28, 0
      %p180 = por %p178, %p179
      %p181 = scmp.ne.s32.totalorder %s169, %s170
      %p182 = scmp.eq.s32.totalorder %s29, 1
      %p183 = por %p181, %p182
      %p185 = scmp.ne.s32.totalorder %s170, %s184
      %p186 = scmp.eq.s32.totalorder %s29, 0
      %p187 = por %p185, %p186
      %s189 = sadd.s32 %s188, 1
      %p192 = scmp.eq.s32.totalorder %s23, 1
      %p193 = scmp.ne.s32.totalorder %s188, %s190
      %p194 = scmp.eq.s32.totalorder %s23, 0
      %p195 = por %p193, %p194
      %p196 = scmp.ne.s32.totalorder %s188, %s190
      %p197 = scmp.eq.s32.totalorder %s28, 1
      %p198 = por %p196, %p197
      %p199 = scmp.ne.s32.totalorder %s190, %s191
      %p200 = scmp.eq.s32.totalorder %s28, 0
      %p201 = por %p199, %p200
      %p202 = scmp.ne.s32.totalorder %s190, %s191
      %p203 = scmp.eq.s32.totalorder %s29, 1
      %p204 = por %p202, %p203
      %p206 = scmp.ne.s32.totalorder %s191, %s205
      %p207 = scmp.eq.s32.totalorder %s29, 0
      %p208 = por %p206, %p207
      %s209 = ssub.s32 %s23, %s30
      %p210 = scmp.eq.s32.totalorder %s209, 0
      %s212 = sadd.s32 %s211, 1
      %s213 = scalar_select %p210, %s211, %s212
      %p216 = pneg %p210
      %p217 = scmp.eq.s32.totalorder %s23, 1
      %p218 = por %p216, %p217
      %p219 = scmp.ne.s32.totalorder %s211, %s214
      %p220 = scmp.eq.s32.totalorder %s23, 0
      %p221 = por %p219, %p220
      %p222 = scmp.ne.s32.totalorder %s211, %s214
      %p223 = scmp.eq.s32.totalorder %s28, 1
      %p224 = por %p222, %p223
      %p225 = scmp.ne.s32.totalorder %s214, %s215
      %p226 = scmp.eq.s32.totalorder %s28, 0
      %p227 = por %p225, %p226
      %p228 = scmp.ne.s32.totalorder %s214, %s215
      %p229 = scmp.eq.s32.totalorder %s29, 1
      %p230 = por %p228, %p229
      %p232 = scmp.ne.s32.totalorder %s215, %s231
      %p233 = scmp.eq.s32.totalorder %s29, 0
      %p234 = por %p232, %p233
      %p235 = scmp.le.s32.totalorder 1, %s23
      %p236 = scmp.lt.s32.totalorder %s23, 3
      %p237 = pnand %p235, %p236
      %p238 = pneg %p237
      // Predicated region
      $region9: #{tpu_custom_call.1} parent=5 // pred_check
        _
      $region10: #{tpu_custom_call.1} parent=5 // pred_check_branch
        %240 = sbr.rel (%p237) target = $region12
      $region11: #{tpu_custom_call.1} parent=5 // pred_region
        %s241 = ssub.s32 %s23, 1
        // Predicated region
        $region13: #{tpu_custom_call.1} parent=11 // pred_check
          %p242 = pneg %p96
        $region14: #{tpu_custom_call.1} parent=11 // pred_check_branch
          %244 = sbr.rel (%p242) target = $region16
        $region15: #{tpu_custom_call.1} parent=11 // pred_region
          _
        $region16: #{tpu_custom_call.1} parent=11 // pred_fallthru
          _
        // Predicated region
        $region17: #{tpu_custom_call.1} parent=11 // pred_check
          %p245 = pneg %p117
        $region18: #{tpu_custom_call.1} parent=11 // pred_check_branch
          %247 = sbr.rel (%p245) target = $region20
        $region19: #{tpu_custom_call.1} parent=11 // pred_region
          _
        $region20: #{tpu_custom_call.1} parent=11 // pred_fallthru
          _
        // Predicated region
        $region21: #{tpu_custom_call.1} parent=11 // pred_check
          %p248 = pneg %p138
        $region22: #{tpu_custom_call.1} parent=11 // pred_check_branch
          %250 = sbr.rel (%p248) target = $region24
        $region23: #{tpu_custom_call.1} parent=11 // pred_region
          _
        $region24: #{tpu_custom_call.1} parent=11 // pred_fallthru
          _
        // Predicated region
        $region25: #{tpu_custom_call.1} parent=11 // pred_check
          %p251 = pneg %p159
        $region26: #{tpu_custom_call.1} parent=11 // pred_check_branch
          %253 = sbr.rel (%p251) target = $region28
        $region27: #{tpu_custom_call.1} parent=11 // pred_region
          _
        $region28: #{tpu_custom_call.1} parent=11 // pred_fallthru
          _
        // Predicated region
        $region29: #{tpu_custom_call.1} parent=11 // pred_check
          %p254 = pneg %p180
        $region30: #{tpu_custom_call.1} parent=11 // pred_check_branch
          %256 = sbr.rel (%p254) target = $region32
        $region31: #{tpu_custom_call.1} parent=11 // pred_region
          _
        $region32: #{tpu_custom_call.1} parent=11 // pred_fallthru
          _
        // Predicated region
        $region33: #{tpu_custom_call.1} parent=11 // pred_check
          %p257 = pneg %p201
        $region34: #{tpu_custom_call.1} parent=11 // pred_check_branch
          %259 = sbr.rel (%p257) target = $region36
        $region35: #{tpu_custom_call.1} parent=11 // pred_region
          _
        $region36: #{tpu_custom_call.1} parent=11 // pred_fallthru
          _
      $region12: #{tpu_custom_call.1} parent=5 // pred_fallthru
        _
      %p260 = scmp.lt.s32.totalorder %s23, 2
      // Predicated region
      $region37: #{tpu_custom_call.1} parent=5 // pred_check
        %p261 = pneg %p260
      $region38: #{tpu_custom_call.1} parent=5 // pred_check_branch
        %263 = sbr.rel (%p261) target = $region40
      $region39: #{tpu_custom_call.1} parent=5 // pred_region
        // Predicated region
        $region41: #{tpu_custom_call.1} parent=39 // pred_check
          %p264 = pneg %p43
        $region42: #{tpu_custom_call.1} parent=39 // pred_check_branch
          %266 = sbr.rel (%p264) target = $region44
        $region43: #{tpu_custom_call.1} parent=39 // pred_region
          %s267 = sand.u32 %s33, 1
          %s268 = scalar_lea.sflag [#allocation3], %s267
          %s269 = sand.u32 %s33, 1
          %s270 = smul.addr %s269, 64
          %s271 = scalar_lea.vmem [#allocation2], %s270
          %273 = vsyncadd %s268, 0
          %s274 = smul.addr %s23, 8
          %s275 = smul.addr %s274, 8
          %s276 = scalar_lea.hbm %s0, %s275
          %s277 = sshll.u32 %s276, 4
          %s278 = int_to_ptr.hbm [resolvable:$true] %s277
          %s279 = sshll.u32 %s271, 4
          %s280 = int_to_ptr.vmem [resolvable:$true] %s279
          %285 = dma.hbm_to_vmem [thread:$0]  %s278, 1024, %s280, %s268, 128, 128, 8
        $region44: #{tpu_custom_call.1} parent=39 // pred_fallthru
          _
        // Predicated region
        $region45: #{tpu_custom_call.1} parent=39 // pred_check
          %p286 = pneg %p69
        $region46: #{tpu_custom_call.1} parent=39 // pred_check_branch
          %288 = sbr.rel (%p286) target = $region48
        $region47: #{tpu_custom_call.1} parent=39 // pred_region
          %s289 = sand.u32 %s59, 1
          %s290 = scalar_lea.sflag [#allocation6], %s289
          %s291 = sand.u32 %s59, 1
          %s292 = smul.addr %s291, 64
          %s293 = scalar_lea.vmem [#allocation5], %s292
          %295 = vsyncadd %s290, 0
          %s296 = smul.addr %s23, 8
          %s297 = smul.addr %s296, 8
          %s298 = scalar_lea.hbm %s1, %s297
          %s299 = sshll.u32 %s298, 4
          %s300 = int_to_ptr.hbm [resolvable:$true] %s299
          %s301 = sshll.u32 %s293, 4
          %s302 = int_to_ptr.vmem [resolvable:$true] %s301
          %307 = dma.hbm_to_vmem [thread:$0]  %s300, 1024, %s302, %s290, 128, 128, 8
        $region48: #{tpu_custom_call.1} parent=39 // pred_fallthru
          _
      $region40: #{tpu_custom_call.1} parent=5 // pred_fallthru
        _
      %p308 = scmp.le.s32.totalorder 1, %s23
      %p309 = scmp.lt.s32.totalorder %s23, 3
      %p310 = pnand %p308, %p309
      %p311 = pneg %p310
      // Predicated region
      $region49: #{tpu_custom_call.1} parent=5 // pred_check
        _
      $region50: #{tpu_custom_call.1} parent=5 // pred_check_branch
        %313 = sbr.rel (%p310) target = $region52
      $region51: #{tpu_custom_call.1} parent=5 // pred_region
        %s314 = ssub.s32 %s23, 1
        %s315 = sand.u32 %s36, 1
        %s316 = scalar_lea.sflag [#allocation3], %s315
        %s317 = sand.u32 %s36, 1
        %s318 = smul.addr %s317, 64
        %s319 = scalar_lea.vmem [#allocation2], %s318
        // Predicated region
        $region53: #{tpu_custom_call.1} parent=51 // pred_check
          %p320 = pneg %p49
        $region54: #{tpu_custom_call.1} parent=51 // pred_check_branch
          %322 = sbr.rel (%p320) target = $region56
        $region55: #{tpu_custom_call.1} parent=51 // pred_region
          %324 = dma.done %s316, 1024
        $region56: #{tpu_custom_call.1} parent=51 // pred_fallthru
          _
        %s325 = sand.u32 %s62, 1
        %s326 = scalar_lea.sflag [#allocation6], %s325
        %s327 = sand.u32 %s62, 1
        %s328 = smul.addr %s327, 64
        %s329 = scalar_lea.vmem [#allocation5], %s328
        // Predicated region
        $region57: #{tpu_custom_call.1} parent=51 // pred_check
          %p330 = pneg %p75
        $region58: #{tpu_custom_call.1} parent=51 // pred_check_branch
          %332 = sbr.rel (%p330) target = $region60
        $region59: #{tpu_custom_call.1} parent=51 // pred_region
          %334 = dma.done %s326, 1024
        $region60: #{tpu_custom_call.1} parent=51 // pred_fallthru
          _
        %s335 = sand.u32 %s36, 1
        %s336 = scalar_lea.sflag [#allocation3], %s335
        %s337 = sand.u32 %s36, 1
        %s338 = smul.addr %s337, 64
        %s339 = scalar_lea.vmem [#allocation2], %s338
        %p340 = pneg %p49
        %p341 = pneg %p46
        %s342 = sand.u32 %s62, 1
        %s343 = scalar_lea.sflag [#allocation6], %s342
        %s344 = sand.u32 %s62, 1
        %s345 = smul.addr %s344, 64
        %s346 = scalar_lea.vmem [#allocation5], %s345
        %p347 = pneg %p75
        %p348 = pneg %p72
        %p349 = pneg %p96
        %p350 = pneg %p93
        %p351 = pneg %p117
        %p352 = pneg %p114
        %p353 = pneg %p138
        %p354 = pneg %p135
        %p355 = pneg %p159
        %p356 = pneg %p156
        %p357 = pneg %p180
        %p358 = pneg %p177
        %p359 = pneg %p201
        %p360 = pneg %p198
        %p361 = pneg %p227
        %p362 = pneg %p224
        %s363 = sand.u32 %s214, 1
        %s364 = scalar_lea.sflag [#allocation4], %s363
        %s365 = sand.u32 %s214, 1
        %s366 = smul.addr %s365, 64
        %s367 = scalar_lea.vmem [#allocation7], %s366
        %v368 = vld [vmem:[%s319] sm:$0xff]
        %v369 = vld [vmem:[%s319 + $0x8] sm:$0xff]
        %v370 = vld [vmem:[%s319 + $0x10] sm:$0xff]
        %v371 = vld [vmem:[%s319 + $0x18] sm:$0xff]
        %v372 = vld [vmem:[%s319 + $0x20] sm:$0xff]
        %v373 = vld [vmem:[%s319 + $0x28] sm:$0xff]
        %v374 = vld [vmem:[%s319 + $0x30] sm:$0xff]
        %v375 = vld [vmem:[%s319 + $0x38] sm:$0xff]
        %v376 = vld [vmem:[%s329] sm:$0xff]
        %v377 = vld [vmem:[%s329 + $0x8] sm:$0xff]
        %v378 = vld [vmem:[%s329 + $0x10] sm:$0xff]
        %v379 = vld [vmem:[%s329 + $0x18] sm:$0xff]
        %v380 = vld [vmem:[%s329 + $0x20] sm:$0xff]
        %v381 = vld [vmem:[%s329 + $0x28] sm:$0xff]
        %v382 = vld [vmem:[%s329 + $0x30] sm:$0xff]
        %v383 = vld [vmem:[%s329 + $0x38] sm:$0xff]
        %v384 = vld [vmem:[%s2] sm:$0xff]
        %v385 = vld [vmem:[%s2 + $0x8] sm:$0xff]
        %v386 = vld [vmem:[%s2 + $0x10] sm:$0xff]
        %v387 = vld [vmem:[%s2 + $0x18] sm:$0xff]
        %v388 = vld [vmem:[%s2 + $0x20] sm:$0xff]
        %v389 = vld [vmem:[%s2 + $0x28] sm:$0xff]
        %v390 = vld [vmem:[%s2 + $0x30] sm:$0xff]
        %v391 = vld [vmem:[%s2 + $0x38] sm:$0xff]
        %v392 = vld [vmem:[%s3] sm:$0x1]
        %v394 = vperm.slane %v392, 0
        %vm396 = vcmask 523264
        %v398 = vsel %vm396, %v368, 0
        %v401 = vsel %vm396, %v369, 0
        %v404 = vsel %vm396, %v370, 0
        %v407 = vsel %vm396, %v371, 0
        %v410 = vsel %vm396, %v372, 0
        %v413 = vsel %vm396, %v373, 0
        %v416 = vsel %vm396, %v374, 0
        %v419 = vsel %vm396, %v375, 0
        %421 = vmatpush.msra.mxu0 0.0
        %422 = vmatpush.msra.mxu0 0.0
        %423 = vmatpush.msra.mxu0 0.0
        %424 = vmatpush.msra.mxu0 0.0
        %425 = vmatpush.msra.mxu0 0.0
        %426 = vmatpush.msra.mxu0 0.0
        %427 = vmatpush.msra.mxu0 0.0
        %428 = vmatpush.msra.mxu0 0.0
        %429 = vmatpush.msra.mxu0 %v391
        %430 = vmatpush.msra.mxu0 %v390
        %431 = vmatpush.msra.mxu0 %v389
        %432 = vmatpush.msra.mxu0 %v388
        %433 = vmatpush.msra.mxu0 %v387
        %434 = vmatpush.msra.mxu0 %v386
        %435 = vmatpush.msra.mxu0 %v385
        %436 = vmatpush.msra.mxu0 %v384
        %437 = vmatmul.f32.gmra.mxu0 %v398
        %v438 = vpop.f32.mrf.mxu0
        %v439 = vadd.f32 %v394, %v438
        %440 = vmatmul.f32.gmra.mxu0 %v401
        %v441 = vpop.f32.mrf.mxu0
        %v442 = vadd.f32 %v394, %v441
        %443 = vmatmul.f32.gmra.mxu0 %v404
        %v444 = vpop.f32.mrf.mxu0
        %v445 = vadd.f32 %v394, %v444
        %446 = vmatmul.f32.gmra.mxu0 %v407
        %v447 = vpop.f32.mrf.mxu0
        %v448 = vadd.f32 %v394, %v447
        %449 = vmatmul.f32.gmra.mxu0 %v410
        %v450 = vpop.f32.mrf.mxu0
        %v451 = vadd.f32 %v394, %v450
        %452 = vmatmul.f32.gmra.mxu0 %v413
        %v453 = vpop.f32.mrf.mxu0
        %v454 = vadd.f32 %v394, %v453
        %455 = vmatmul.f32.gmra.mxu0 %v416
        %v456 = vpop.f32.mrf.mxu0
        %v457 = vadd.f32 %v394, %v456
        %458 = vmatmul.f32.gmra.mxu0 %v419
        %v459 = vpop.f32.mrf.mxu0
        %v460 = vadd.f32 %v394, %v459
        %461 = vdwg.mxu0
        %v462 = vld [vmem:[%s4] sm:$0xff]
        %v463 = vld [vmem:[%s4 + $0x8] sm:$0xff]
        %v464 = vld [vmem:[%s4 + $0x10] sm:$0xff]
        %v465 = vld [vmem:[%s4 + $0x18] sm:$0xff]
        %v466 = vld [vmem:[%s4 + $0x20] sm:$0xff]
        %v467 = vld [vmem:[%s4 + $0x28] sm:$0xff]
        %v468 = vld [vmem:[%s4 + $0x30] sm:$0xff]
        %v469 = vld [vmem:[%s4 + $0x38] sm:$0xff]
        %v470 = vld [vmem:[%s5] sm:$0x1]
        %v472 = vperm.slane %v470, 0
        %v475 = vsel %vm396, %v376, 0
        %v478 = vsel %vm396, %v377, 0
        %v481 = vsel %vm396, %v378, 0
        %v484 = vsel %vm396, %v379, 0
        %v487 = vsel %vm396, %v380, 0
        %v490 = vsel %vm396, %v381, 0
        %v493 = vsel %vm396, %v382, 0
        %v496 = vsel %vm396, %v383, 0
        %498 = vmatpush.msra.mxu0 0.0
        %499 = vmatpush.msra.mxu0 0.0
        %500 = vmatpush.msra.mxu0 0.0
        %501 = vmatpush.msra.mxu0 0.0
        %502 = vmatpush.msra.mxu0 0.0
        %503 = vmatpush.msra.mxu0 0.0
        %504 = vmatpush.msra.mxu0 0.0
        %505 = vmatpush.msra.mxu0 0.0
        %506 = vmatpush.msra.mxu0 %v469
        %507 = vmatpush.msra.mxu0 %v468
        %508 = vmatpush.msra.mxu0 %v467
        %509 = vmatpush.msra.mxu0 %v466
        %510 = vmatpush.msra.mxu0 %v465
        %511 = vmatpush.msra.mxu0 %v464
        %512 = vmatpush.msra.mxu0 %v463
        %513 = vmatpush.msra.mxu0 %v462
        %514 = vmatmul.f32.gmra.mxu0 %v475
        %v515 = vpop.f32.mrf.mxu0
        %v516 = vadd.f32 %v472, %v515
        %517 = vmatmul.f32.gmra.mxu0 %v478
        %v518 = vpop.f32.mrf.mxu0
        %v519 = vadd.f32 %v472, %v518
        %520 = vmatmul.f32.gmra.mxu0 %v481
        %v521 = vpop.f32.mrf.mxu0
        %v522 = vadd.f32 %v472, %v521
        %523 = vmatmul.f32.gmra.mxu0 %v484
        %v524 = vpop.f32.mrf.mxu0
        %v525 = vadd.f32 %v472, %v524
        %526 = vmatmul.f32.gmra.mxu0 %v487
        %v527 = vpop.f32.mrf.mxu0
        %v528 = vadd.f32 %v472, %v527
        %529 = vmatmul.f32.gmra.mxu0 %v490
        %v530 = vpop.f32.mrf.mxu0
        %v531 = vadd.f32 %v472, %v530
        %532 = vmatmul.f32.gmra.mxu0 %v493
        %v533 = vpop.f32.mrf.mxu0
        %v534 = vadd.f32 %v472, %v533
        %535 = vmatmul.f32.gmra.mxu0 %v496
        %v536 = vpop.f32.mrf.mxu0
        %v537 = vadd.f32 %v472, %v536
        %538 = vdwg.mxu0
        %547 = vrot.lane.b32.xlu0 %v439, 96
        %v548 = vpop.permute.xlu0 %547
        %549 = vrot.lane.b32.xlu0 %v442, 96
        %v550 = vpop.permute.xlu0 %549
        %551 = vrot.lane.b32.xlu0 %v445, 96
        %v552 = vpop.permute.xlu0 %551
        %553 = vrot.lane.b32.xlu0 %v448, 96
        %v554 = vpop.permute.xlu0 %553
        %555 = vrot.lane.b32.xlu0 %v451, 96
        %v556 = vpop.permute.xlu0 %555
        %557 = vrot.lane.b32.xlu0 %v454, 96
        %v558 = vpop.permute.xlu0 %557
        %559 = vrot.lane.b32.xlu0 %v457, 96
        %v560 = vpop.permute.xlu0 %559
        %561 = vrot.lane.b32.xlu0 %v460, 96
        %v562 = vpop.permute.xlu0 %561
        %vm563 = vcmask 261120
        %v565 = vsel %vm563, %v516, 0
        %v568 = vsel %vm563, %v519, 0
        %v571 = vsel %vm563, %v522, 0
        %v574 = vsel %vm563, %v525, 0
        %v577 = vsel %vm563, %v528, 0
        %v580 = vsel %vm563, %v531, 0
        %v583 = vsel %vm563, %v534, 0
        %v586 = vsel %vm563, %v537, 0
        %v588 = vsel %vm563, %v548, 0
        %v590 = vsel %vm563, %v550, 0
        %v592 = vsel %vm563, %v552, 0
        %v594 = vsel %vm563, %v554, 0
        %v596 = vsel %vm563, %v556, 0
        %v598 = vsel %vm563, %v558, 0
        %v600 = vsel %vm563, %v560, 0
        %v602 = vsel %vm563, %v562, 0
        %604 = vmatpush.xpose.msra.mxu0 0.0
        %605 = vmatpush.xpose.msra.mxu0 0.0
        %606 = vmatpush.xpose.msra.mxu0 0.0
        %607 = vmatpush.xpose.msra.mxu0 0.0
        %608 = vmatpush.xpose.msra.mxu0 0.0
        %609 = vmatpush.xpose.msra.mxu0 0.0
        %610 = vmatpush.xpose.msra.mxu0 0.0
        %611 = vmatpush.xpose.msra.mxu0 0.0
        %612 = vmatpush.xpose.msra.mxu0 %v602
        %613 = vmatpush.xpose.msra.mxu0 %v600
        %614 = vmatpush.xpose.msra.mxu0 %v598
        %615 = vmatpush.xpose.msra.mxu0 %v596
        %616 = vmatpush.xpose.msra.mxu0 %v594
        %617 = vmatpush.xpose.msra.mxu0 %v592
        %618 = vmatpush.xpose.msra.mxu0 %v590
        %619 = vmatpush.xpose.msra.mxu0 %v588
        %620 = vmatmul.f32.gmra.mxu0 %v565
        %v621 = vpop.f32.mrf.mxu0
        %v622 = vadd.f32 0.0, %v621
        %623 = vmatmul.f32.gmra.mxu0 %v568
        %v624 = vpop.f32.mrf.mxu0
        %v625 = vadd.f32 0.0, %v624
        %626 = vmatmul.f32.gmra.mxu0 %v571
        %v627 = vpop.f32.mrf.mxu0
        %v628 = vadd.f32 0.0, %v627
        %629 = vmatmul.f32.gmra.mxu0 %v574
        %v630 = vpop.f32.mrf.mxu0
        %v631 = vadd.f32 0.0, %v630
        %632 = vmatmul.f32.gmra.mxu0 %v577
        %v633 = vpop.f32.mrf.mxu0
        %v634 = vadd.f32 0.0, %v633
        %635 = vmatmul.f32.gmra.mxu0 %v580
        %v636 = vpop.f32.mrf.mxu0
        %v637 = vadd.f32 0.0, %v636
        %638 = vmatmul.f32.gmra.mxu0 %v583
        %v639 = vpop.f32.mrf.mxu0
        %v640 = vadd.f32 0.0, %v639
        %641 = vmatmul.f32.gmra.mxu0 %v586
        %v642 = vpop.f32.mrf.mxu0
        %v643 = vadd.f32 0.0, %v642
        %644 = vdwg.mxu0
        %v645 = vsel %vm396, %v622, -inf
        %646 = vmax.xlane.f32.xlu0 %v645
        %v647 = vpop.xlane.xlu0 %646
        %v648 = vsel %vm396, %v625, -inf
        %649 = vmax.xlane.f32.xlu0 %v648
        %v650 = vpop.xlane.xlu0 %649
        %v651 = vsel %vm396, %v628, -inf
        %652 = vmax.xlane.f32.xlu0 %v651
        %v653 = vpop.xlane.xlu0 %652
        %v654 = vsel %vm396, %v631, -inf
        %655 = vmax.xlane.f32.xlu0 %v654
        %v656 = vpop.xlane.xlu0 %655
        %v657 = vsel %vm396, %v634, -inf
        %658 = vmax.xlane.f32.xlu0 %v657
        %v659 = vpop.xlane.xlu0 %658
        %v660 = vsel %vm396, %v637, -inf
        %661 = vmax.xlane.f32.xlu0 %v660
        %v662 = vpop.xlane.xlu0 %661
        %v663 = vsel %vm396, %v640, -inf
        %664 = vmax.xlane.f32.xlu0 %v663
        %v665 = vpop.xlane.xlu0 %664
        %v666 = vsel %vm396, %v643, -inf
        %667 = vmax.xlane.f32.xlu0 %v666
        %v668 = vpop.xlane.xlu0 %667
        %v669 = vsub.f32 %v622, %v647
        %v670 = vsub.f32 %v625, %v650
        %v671 = vsub.f32 %v628, %v653
        %v672 = vsub.f32 %v631, %v656
        %v673 = vsub.f32 %v634, %v659
        %v674 = vsub.f32 %v637, %v662
        %v675 = vsub.f32 %v640, %v665
        %v676 = vsub.f32 %v643, %v668
        %v677 = vmul.f32 %v669, 1.442695
        %v678 = vpow.pop %v677
        %v679 = vmul.f32 %v670, 1.442695
        %v680 = vpow.pop %v679
        %v681 = vmul.f32 %v671, 1.442695
        %v682 = vpow.pop %v681
        %v683 = vmul.f32 %v672, 1.442695
        %v684 = vpow.pop %v683
        %v685 = vmul.f32 %v673, 1.442695
        %v686 = vpow.pop %v685
        %v687 = vmul.f32 %v674, 1.442695
        %v688 = vpow.pop %v687
        %v689 = vmul.f32 %v675, 1.442695
        %v690 = vpow.pop %v689
        %v691 = vmul.f32 %v676, 1.442695
        %v692 = vpow.pop %v691
        %v693 = vsel %vm396, %v678, 0.0
        %694 = vadd.xlane.f32.xlu0 %v693
        %v695 = vpop.xlane.xlu0 %694
        %v696 = vsel %vm396, %v680, 0.0
        %697 = vadd.xlane.f32.xlu0 %v696
        %v698 = vpop.xlane.xlu0 %697
        %v699 = vsel %vm396, %v682, 0.0
        %700 = vadd.xlane.f32.xlu0 %v699
        %v701 = vpop.xlane.xlu0 %700
        %v702 = vsel %vm396, %v684, 0.0
        %703 = vadd.xlane.f32.xlu0 %v702
        %v704 = vpop.xlane.xlu0 %703
        %v705 = vsel %vm396, %v686, 0.0
        %706 = vadd.xlane.f32.xlu0 %v705
        %v707 = vpop.xlane.xlu0 %706
        %v708 = vsel %vm396, %v688, 0.0
        %709 = vadd.xlane.f32.xlu0 %v708
        %v710 = vpop.xlane.xlu0 %709
        %v711 = vsel %vm396, %v690, 0.0
        %712 = vadd.xlane.f32.xlu0 %v711
        %v713 = vpop.xlane.xlu0 %712
        %v714 = vsel %vm396, %v692, 0.0
        %715 = vadd.xlane.f32.xlu0 %v714
        %v716 = vpop.xlane.xlu0 %715
        %v717 = vrcp.pop %v695
        %v718 = vrcp.pop %v698
        %v719 = vrcp.pop %v701
        %v720 = vrcp.pop %v704
        %v721 = vrcp.pop %v707
        %v722 = vrcp.pop %v710
        %v723 = vrcp.pop %v713
        %v724 = vrcp.pop %v716
        %v725 = vmul.f32 %v678, %v717
        %v726 = vmul.f32 %v680, %v718
        %v727 = vmul.f32 %v682, %v719
        %v728 = vmul.f32 %v684, %v720
        %v729 = vmul.f32 %v686, %v721
        %v730 = vmul.f32 %v688, %v722
        %v731 = vmul.f32 %v690, %v723
        %v732 = vmul.f32 %v692, %v724
        %v734 = vsel %vm396, %v725, 0
        %v737 = vsel %vm396, %v726, 0
        %v740 = vsel %vm396, %v727, 0
        %v743 = vsel %vm396, %v728, 0
        %v746 = vsel %vm396, %v729, 0
        %v749 = vsel %vm396, %v730, 0
        %v752 = vsel %vm396, %v731, 0
        %v755 = vsel %vm396, %v732, 0
        %757 = vmatpush.msra.mxu0 0.0
        %758 = vmatpush.msra.mxu0 0.0
        %759 = vmatpush.msra.mxu0 0.0
        %760 = vmatpush.msra.mxu0 0.0
        %761 = vmatpush.msra.mxu0 0.0
        %762 = vmatpush.msra.mxu0 0.0
        %763 = vmatpush.msra.mxu0 0.0
        %764 = vmatpush.msra.mxu0 0.0
        %765 = vmatpush.msra.mxu0 %v460
        %766 = vmatpush.msra.mxu0 %v457
        %767 = vmatpush.msra.mxu0 %v454
        %768 = vmatpush.msra.mxu0 %v451
        %769 = vmatpush.msra.mxu0 %v448
        %770 = vmatpush.msra.mxu0 %v445
        %771 = vmatpush.msra.mxu0 %v442
        %772 = vmatpush.msra.mxu0 %v439
        %773 = vmatmul.f32.gmra.mxu0 %v734
        %v774 = vpop.f32.mrf.mxu0
        %v775 = vadd.f32 0.0, %v774
        %776 = vmatmul.f32.gmra.mxu0 %v737
        %v777 = vpop.f32.mrf.mxu0
        %v778 = vadd.f32 0.0, %v777
        %779 = vmatmul.f32.gmra.mxu0 %v740
        %v780 = vpop.f32.mrf.mxu0
        %v781 = vadd.f32 0.0, %v780
        %782 = vmatmul.f32.gmra.mxu0 %v743
        %v783 = vpop.f32.mrf.mxu0
        %v784 = vadd.f32 0.0, %v783
        %785 = vmatmul.f32.gmra.mxu0 %v746
        %v786 = vpop.f32.mrf.mxu0
        %v787 = vadd.f32 0.0, %v786
        %788 = vmatmul.f32.gmra.mxu0 %v749
        %v789 = vpop.f32.mrf.mxu0
        %v790 = vadd.f32 0.0, %v789
        %791 = vmatmul.f32.gmra.mxu0 %v752
        %v792 = vpop.f32.mrf.mxu0
        %v793 = vadd.f32 0.0, %v792
        %794 = vmatmul.f32.gmra.mxu0 %v755
        %v795 = vpop.f32.mrf.mxu0
        %v796 = vadd.f32 0.0, %v795
        %797 = vdwg.mxu0
        %v798 = vld [vmem:[%s6] sm:$0xff]
        %v799 = vld [vmem:[%s6 + $0x8] sm:$0xff]
        %v800 = vld [vmem:[%s6 + $0x10] sm:$0xff]
        %v801 = vld [vmem:[%s6 + $0x18] sm:$0xff]
        %v802 = vld [vmem:[%s7] sm:$0x1]
        %v804 = vperm.slane %v802, 0
        %v807 = vsel %vm563, %v775, 0
        %v810 = vsel %vm563, %v778, 0
        %v813 = vsel %vm563, %v781, 0
        %v816 = vsel %vm563, %v784, 0
        %v819 = vsel %vm563, %v787, 0
        %v822 = vsel %vm563, %v790, 0
        %v825 = vsel %vm563, %v793, 0
        %v828 = vsel %vm563, %v796, 0
        %830 = vmatpush.msra.mxu0 0.0
        %831 = vmatpush.msra.mxu0 0.0
        %832 = vmatpush.msra.mxu0 0.0
        %833 = vmatpush.msra.mxu0 0.0
        %834 = vmatpush.msra.mxu0 0.0
        %835 = vmatpush.msra.mxu0 0.0
        %836 = vmatpush.msra.mxu0 0.0
        %837 = vmatpush.msra.mxu0 0.0
        %838 = vmatpush.msra.mxu0 0.0
        %839 = vmatpush.msra.mxu0 0.0
        %840 = vmatpush.msra.mxu0 0.0
        %841 = vmatpush.msra.mxu0 0.0
        %842 = vmatpush.msra.mxu0 %v801
        %843 = vmatpush.msra.mxu0 %v800
        %844 = vmatpush.msra.mxu0 %v799
        %845 = vmatpush.msra.mxu0 %v798
        %846 = vmatmul.f32.gmra.mxu0 %v807
        %v847 = vpop.f32.mrf.mxu0
        %v848 = vadd.f32 %v804, %v847
        %849 = vmatmul.f32.gmra.mxu0 %v810
        %v850 = vpop.f32.mrf.mxu0
        %v851 = vadd.f32 %v804, %v850
        %852 = vmatmul.f32.gmra.mxu0 %v813
        %v853 = vpop.f32.mrf.mxu0
        %v854 = vadd.f32 %v804, %v853
        %855 = vmatmul.f32.gmra.mxu0 %v816
        %v856 = vpop.f32.mrf.mxu0
        %v857 = vadd.f32 %v804, %v856
        %858 = vmatmul.f32.gmra.mxu0 %v819
        %v859 = vpop.f32.mrf.mxu0
        %v860 = vadd.f32 %v804, %v859
        %861 = vmatmul.f32.gmra.mxu0 %v822
        %v862 = vpop.f32.mrf.mxu0
        %v863 = vadd.f32 %v804, %v862
        %864 = vmatmul.f32.gmra.mxu0 %v825
        %v865 = vpop.f32.mrf.mxu0
        %v866 = vadd.f32 %v804, %v865
        %867 = vmatmul.f32.gmra.mxu0 %v828
        %v868 = vpop.f32.mrf.mxu0
        %v869 = vadd.f32 %v804, %v868
        %870 = vdwg.mxu0
        %v871 = vadd.f32 %v848, %v368
        %v872 = vadd.f32 %v851, %v369
        %v873 = vadd.f32 %v854, %v370
        %v874 = vadd.f32 %v857, %v371
        %v875 = vadd.f32 %v860, %v372
        %v876 = vadd.f32 %v863, %v373
        %v877 = vadd.f32 %v866, %v374
        %v878 = vadd.f32 %v869, %v375
        %879 = vst.msk [vmem:[%s367] sm:$0xff] %vm396, %v871
        %880 = vst.msk [vmem:[%s367 + $0x8] sm:$0xff] %vm396, %v872
        %881 = vst.msk [vmem:[%s367 + $0x10] sm:$0xff] %vm396, %v873
        %882 = vst.msk [vmem:[%s367 + $0x18] sm:$0xff] %vm396, %v874
        %883 = vst.msk [vmem:[%s367 + $0x20] sm:$0xff] %vm396, %v875
        %884 = vst.msk [vmem:[%s367 + $0x28] sm:$0xff] %vm396, %v876
        %885 = vst.msk [vmem:[%s367 + $0x30] sm:$0xff] %vm396, %v877
        %886 = vst.msk [vmem:[%s367 + $0x38] sm:$0xff] %vm396, %v878
        %s887 = sand.u32 %s214, 1
        %s888 = scalar_lea.sflag [#allocation4], %s887
        %s889 = sand.u32 %s214, 1
        %s890 = smul.addr %s889, 64
        %s891 = scalar_lea.vmem [#allocation7], %s890
        // Predicated region
        $region61: #{tpu_custom_call.1} parent=51 // pred_check
          %p892 = pneg %p224
        $region62: #{tpu_custom_call.1} parent=51 // pred_check_branch
          %894 = sbr.rel (%p892) target = $region64
        $region63: #{tpu_custom_call.1} parent=51 // pred_region
          %896 = vsyncadd %s888, 0
          %s897 = smul.addr %s28, 8
          %s898 = smul.addr %s897, 8
          %s899 = scalar_lea.hbm %s8, %s898
          %s900 = sshll.u32 %s891, 4
          %s901 = int_to_ptr.vmem [resolvable:$true] %s900
          %s902 = sshll.u32 %s899, 4
          %s903 = int_to_ptr.hbm [resolvable:$true] %s902
          %908 = dma.vmem_to_hbm [thread:$0]  %s901, 1024, %s903, %s888, 128, 128, 8
        $region64: #{tpu_custom_call.1} parent=51 // pred_fallthru
          _
      $region52: #{tpu_custom_call.1} parent=5 // pred_fallthru
        _
      %p909 = scmp.le.s32.totalorder 2, %s23
      // Predicated region
      $region65: #{tpu_custom_call.1} parent=5 // pred_check
        %p910 = pneg %p909
      $region66: #{tpu_custom_call.1} parent=5 // pred_check_branch
        %912 = sbr.rel (%p910) target = $region68
      $region67: #{tpu_custom_call.1} parent=5 // pred_region
        %s913 = ssub.s32 %s23, 2
        // Predicated region
        $region69: #{tpu_custom_call.1} parent=67 // pred_check
          %p914 = pneg %p230
        $region70: #{tpu_custom_call.1} parent=67 // pred_check_branch
          %916 = sbr.rel (%p914) target = $region72
        $region71: #{tpu_custom_call.1} parent=67 // pred_region
          %s917 = sand.u32 %s215, 1
          %s918 = scalar_lea.sflag [#allocation4], %s917
          %s919 = sand.u32 %s215, 1
          %s920 = smul.addr %s919, 64
          %s921 = scalar_lea.vmem [#allocation7], %s920
          %923 = dma.done %s918, 1024
        $region72: #{tpu_custom_call.1} parent=67 // pred_fallthru
          _
      $region68: #{tpu_custom_call.1} parent=5 // pred_fallthru
        _
    $region6: #{tpu_custom_call.1} parent=1 // loop_footer
      %s27 = sadd.s32 1, %s23
    $region7: #{tpu_custom_call.1} parent=1 // loop_footer_branch
      %22 = sbr.rel target = $region3
    $region8: #{tpu_custom_call.1} parent=1 // loop_exit
      _
    %924 = vsyncpa [#allocation3], 1
    %s925 = scalar_lea.sflag [#allocation3], 1
    %926 = vsyncpa %s925, 1
    %927 = vsyncpa [#allocation6], 1
    %s928 = scalar_lea.sflag [#allocation6], 1
    %929 = vsyncpa %s928, 1
    %930 = vsyncpa [#allocation4], 1
    %s931 = scalar_lea.sflag [#allocation4], 1
    %932 = vsyncpa %s931, 1

</llo_original>
